<compile_context>
chip_gen: v7x
topology: tpu7x:2x2x1
jax: 0.10.0
libtpu: 0.0.40
codegen_flags: <defaults>
</compile_context>

<pallas_src>
import functools

import jax
import jax.numpy as jnp
from jax.experimental import pallas as pl
from jax.experimental.pallas import tpu as pltpu


def _round_up(x, m):
    return ((x + m - 1) // m) * m


def _conv_module_kernel(x_ref, w1_ref, b1_ref, w2_ref, b2_ref, o_ref):
    # x_ref : (row_tile, KCp)  im2col rows (bf16 or f32), lane-padded to 128k
    # w1_ref: (KCp, KHp)       expanded conv1 weights (produces conv2 im2col)
    # b1_ref: (1, KHp)         f32, tiled conv1 bias
    # w2_ref: (KHp, Cp)        flattened conv2 weights
    # b2_ref: (1, Cp)          f32
    # o_ref : (row_tile, Cp)   f32, lane-dense output
    z = b1_ref[...] + jnp.dot(x_ref[...], w1_ref[...],
                              preferred_element_type=jnp.float32)
    z = jnp.where(z >= 0.0, z, 0.01 * z)          # LeakyReLU(0.01), f32 on VPU
    # TODO(synk): Dropout is treated as identity (eval mode); training-mode
    # dropout would need pltpu.prng_seed/prng_random_bits masking.
    y = b2_ref[...] + jnp.dot(z.astype(w2_ref.dtype), w2_ref[...],
                              preferred_element_type=jnp.float32)
    o_ref[...] = jnp.tanh(y)


def pack_params(w1, b1, w2, b2, *, compute_dtype=jnp.bfloat16):
    """One-time weight packing (hoisted out of the per-call forward).

    w1: (K1, C, H), b1: (H,), w2: (K2, H, C), b2: (C,)  [tap, in_ch, out_ch].
    Returns (w1_packed, b1_packed, w2_packed, b2_packed) with MXU operands in
    `compute_dtype` and biases in f32.
    """
    K1, C, H = w1.shape
    K2 = w2.shape[0]
    Ktot = K1 + K2 - 1
    KC, KH = Ktot * C, K2 * H
    KCp, KHp, Cp = _round_up(KC, 128), _round_up(KH, 128), _round_up(C, 128)

    # W1big[(j+j1)*C + c, j*H + h] = w1[j1, c, h]  (zero elsewhere): conv1
    # matmul output column j*H+h at row t equals conv1 output at time t+j.
    w1big = jnp.zeros((Ktot, C, K2, H), jnp.float32)
    for j in range(K2):
        w1big = w1big.at[j:j + K1, :, j, :].set(w1.astype(jnp.float32))
    w1big = w1big.reshape(KC, KH)
    w1big = jnp.pad(w1big, ((0, KCp - KC), (0, KHp - KH))).astype(compute_dtype)

    b1big = jnp.pad(jnp.tile(b1.astype(jnp.float32), K2),
                    (0, KHp - KH)).reshape(1, KHp)

    w2f = w2.astype(jnp.float32).reshape(KH, C)          # row = j*H + h
    w2f = jnp.pad(w2f, ((0, KHp - KH), (0, Cp - C))).astype(compute_dtype)
    b2p = jnp.pad(b2.astype(jnp.float32), (0, Cp - C)).reshape(1, Cp)
    return w1big, b1big, w2f, b2p


@functools.partial(jax.jit, static_argnames=("kernel_size",))
def conv_module_forward(x, w1p, b1p, w2p, b2p, *, kernel_size):
    """x: (N, T, C) f32; packed params from pack_params. Returns (N, T_out, C)."""
    N, T, C = x.shape
    K1, K2 = kernel_size, 3
    pad = (K1 - 1) // 2 + 1
    Ktot = K1 + K2 - 1
    T_out = T + 2 * pad - Ktot + 1           # == T for odd kernel_size
    KCp, KHp = w1p.shape
    Cp = w2p.shape[1]
    compute_dtype = w1p.dtype

    # Replication (edge) pad along time, then Ktot-tap im2col (per batch, so
    # windows never cross sequence boundaries), fold batch onto rows.
    xp = jnp.pad(x, ((0, 0), (pad, pad), (0, 0)), mode="edge")      # (N, Tp, C)
    x_cat = jnp.concatenate([xp[:, j:j + T_out, :] for j in range(Ktot)],
                            axis=-1)                                # (N, T_out, Ktot*C)
    x_cat = x_cat.reshape(N * T_out, Ktot * C)

    rows = N * T_out
    row_tile = min(512, _round_up(rows, 8))
    rows_p = _round_up(rows, row_tile)
    x_cat = jnp.pad(x_cat, ((0, rows_p - rows),
                            (0, KCp - Ktot * C))).astype(compute_dtype)

    out = pl.pallas_call(
        _conv_module_kernel,
        out_shape=jax.ShapeDtypeStruct((rows_p, Cp), jnp.float32),
        grid=(rows_p // row_tile,),
        in_specs=[
            pl.BlockSpec((row_tile, KCp), lambda i: (i, 0)),
            pl.BlockSpec((KCp, KHp), lambda i: (0, 0)),   # grid-invariant weights
            pl.BlockSpec((1, KHp), lambda i: (0, 0)),
            pl.BlockSpec((KHp, Cp), lambda i: (0, 0)),
            pl.BlockSpec((1, Cp), lambda i: (0, 0)),
        ],
        out_specs=pl.BlockSpec((row_tile, Cp), lambda i: (i, 0)),
        compiler_params=pltpu.CompilerParams(
            dimension_semantics=("parallel",)),   # row tiles split across TCs (v7x)
    )(x_cat, w1p, b1p, w2p, b2p)

    return out[:rows].reshape(N, T_out, Cp)[:, :, :C]


def _reference_forward(x, w1, b1, w2, b2, *, kernel_size):
    """Pure-JAX f32 reference of the same math (correctness check)."""
    pad = (kernel_size - 1) // 2 + 1
    xp = jnp.pad(x, ((0, 0), (pad, pad), (0, 0)), mode="edge")
    K1, K2 = w1.shape[0], w2.shape[0]
    T2 = xp.shape[1] - K1 + 1
    y1 = b1[None, None, :]
    for j in range(K1):
        y1 = y1 + jnp.einsum("ntc,ch->nth", xp[:, j:j + T2], w1[j])
    y1 = jnp.where(y1 >= 0, y1, 0.01 * y1)
    T = T2 - K2 + 1
    y2 = b2[None, None, :]
    for j in range(K2):
        y2 = y2 + jnp.einsum("nth,hc->ntc", y1[:, j:j + T], w2[j])
    return jnp.tanh(y2)


if __name__ == "__main__":
    # Module hyper-parameters (odd kernel_size -> output length == input length).
    num_in_feats = 8          # C
    kernel_size = 5           # k (odd)
    expansion_rate = 2.0      # -> H = 16
    H = int(expansion_rate * num_in_feats)

    batch, seq = 2, 16        # N, T

    key = jax.random.PRNGKey(0)
    kx, kw1, kb1, kw2, kb2 = jax.random.split(key, 5)

    x = jax.random.normal(kx, (batch, seq, num_in_feats), dtype=jnp.float32)

    # Synthetic parameters (shapes mirror the PyTorch Conv1d layers, stored
    # tap-major / channels-last: W[tap, in_ch, out_ch]).
    w1 = 0.1 * jax.random.normal(kw1, (kernel_size, num_in_feats, H), jnp.float32)
    b1 = 0.1 * jax.random.normal(kb1, (H,), jnp.float32)
    w2 = 0.1 * jax.random.normal(kw2, (3, H, num_in_feats), jnp.float32)
    b2 = 0.1 * jax.random.normal(kb2, (num_in_feats,), jnp.float32)

    ref = _reference_forward(x, w1, b1, w2, b2, kernel_size=kernel_size)

    # bf16 MXU operands (default, per perf review) — f32 accumulation/elementwise.
    packed_bf16 = pack_params(w1, b1, w2, b2, compute_dtype=jnp.bfloat16)
    out = conv_module_forward(x, *packed_bf16, kernel_size=kernel_size)
    out = jax.block_until_ready(out)
    assert out.shape == (batch, seq, num_in_feats), out.shape
    assert jnp.allclose(out, ref, atol=5e-2, rtol=5e-2), "bf16 path mismatch"

    # f32 path for a tight numerical check of the kernel math itself.
    packed_f32 = pack_params(w1, b1, w2, b2, compute_dtype=jnp.float32)
    out32 = conv_module_forward(x, *packed_f32, kernel_size=kernel_size)
    out32 = jax.block_until_ready(out32)
    assert jnp.allclose(out32, ref, atol=1e-5, rtol=1e-5), "f32 path mismatch"

    print("KERNEL_OK")
</pallas_src>

<mosaic_0001>
module attributes {stable_mosaic.version = 11 : i64} {
  func.func @_conv_module_kernel(%arg0: i32, %arg1: memref<32x128xbf16, #tpu.memory_space<vmem>>, %arg2: memref<128x128xbf16, #tpu.memory_space<vmem>>, %arg3: memref<1x128xf32, #tpu.memory_space<vmem>>, %arg4: memref<128x128xbf16, #tpu.memory_space<vmem>>, %arg5: memref<1x128xf32, #tpu.memory_space<vmem>>, %arg6: memref<32x128xf32, #tpu.memory_space<vmem>>) attributes {dimension_semantics = [#tpu.dimension_semantics<parallel>], iteration_bounds = array<i64: 1>, scalar_prefetch = 0 : i64, scratch_operands = 0 : i64, tpu.core_type = #tpu.core_type<tc>, window_params = [{transform_indices = @transform_0, window_bounds = array<i64: 32, 128>}, {pipeline_mode = #tpu.pipeline_mode<synchronous>, transform_indices = @transform_1, window_bounds = array<i64: 128, 128>}, {pipeline_mode = #tpu.pipeline_mode<synchronous>, transform_indices = @transform_2, window_bounds = array<i64: 1, 128>}, {pipeline_mode = #tpu.pipeline_mode<synchronous>, transform_indices = @transform_3, window_bounds = array<i64: 128, 128>}, {pipeline_mode = #tpu.pipeline_mode<synchronous>, transform_indices = @transform_4, window_bounds = array<i64: 1, 128>}, {transform_indices = @transform_5, window_bounds = array<i64: 32, 128>}]} {
    %c0 = arith.constant 0 : index
    %c0_0 = arith.constant 0 : index
    %0 = vector.load %arg3[%c0, %c0_0] : memref<1x128xf32, #tpu.memory_space<vmem>>, vector<1x128xf32>
    %c0_1 = arith.constant 0 : index
    %c0_2 = arith.constant 0 : index
    %1 = vector.load %arg1[%c0_1, %c0_2] : memref<32x128xbf16, #tpu.memory_space<vmem>>, vector<32x128xbf16>
    %c0_3 = arith.constant 0 : index
    %c0_4 = arith.constant 0 : index
    %2 = vector.load %arg2[%c0_3, %c0_4] : memref<128x128xbf16, #tpu.memory_space<vmem>>, vector<128x128xbf16>
    %cst = arith.constant dense<0.000000e+00> : vector<32x128xf32>
    %3 = tpu.matmul %1, %2, %cst {dimension_numbers = #tpu.dot_dimension_numbers<[1], [0], [0], [1], [0, 0, 1, 1], [], []>} : vector<32x128xbf16>, vector<128x128xbf16>, vector<32x128xf32> -> vector<32x128xf32>
    %4 = vector.broadcast %0 : vector<1x128xf32> to vector<32x128xf32>
    %5 = arith.addf %4, %3 : vector<32x128xf32>
    %cst_5 = arith.constant 0.000000e+00 : f32
    %6 = vector.broadcast %cst_5 : f32 to vector<32x128xf32>
    %7 = arith.cmpf oge, %5, %6 : vector<32x128xf32>
    %cst_6 = arith.constant 0.00999999977 : f32
    %8 = vector.broadcast %cst_6 : f32 to vector<32x128xf32>
    %9 = arith.mulf %8, %5 : vector<32x128xf32>
    %10 = arith.select %7, %5, %9 : vector<32x128xi1>, vector<32x128xf32>
    %c0_7 = arith.constant 0 : index
    %c0_8 = arith.constant 0 : index
    %11 = vector.load %arg5[%c0_7, %c0_8] : memref<1x128xf32, #tpu.memory_space<vmem>>, vector<1x128xf32>
    %12 = arith.truncf %10 : vector<32x128xf32> to vector<32x128xbf16>
    %c0_9 = arith.constant 0 : index
    %c0_10 = arith.constant 0 : index
    %13 = vector.load %arg4[%c0_9, %c0_10] : memref<128x128xbf16, #tpu.memory_space<vmem>>, vector<128x128xbf16>
    %cst_11 = arith.constant dense<0.000000e+00> : vector<32x128xf32>
    %14 = tpu.matmul %12, %13, %cst_11 {dimension_numbers = #tpu.dot_dimension_numbers<[1], [0], [0], [1], [0, 0, 1, 1], [], []>} : vector<32x128xbf16>, vector<128x128xbf16>, vector<32x128xf32> -> vector<32x128xf32>
    %15 = vector.broadcast %11 : vector<1x128xf32> to vector<32x128xf32>
    %16 = arith.addf %15, %14 : vector<32x128xf32>
    %17 = math.tanh %16 : vector<32x128xf32>
    %c0_12 = arith.constant 0 : index
    %c0_13 = arith.constant 0 : index
    %18 = vector.load %arg6[%c0_12, %c0_13] : memref<32x128xf32, #tpu.memory_space<vmem>>, vector<32x128xf32>
    tpu.vector_store %arg6[%c0_12, %c0_13], %17 {strides = array<i32>} : memref<32x128xf32, #tpu.memory_space<vmem>>, vector<32x128xf32>,
    return
  }
  func.func @transform_0(%arg0: i32) -> (i32, i32) {
    %c0_i32 = arith.constant 0 : i32
    %c0_i32_0 = arith.constant 0 : i32
    return %arg0, %c0_i32 : i32, i32
  }
  func.func @transform_1(%arg0: i32) -> (i32, i32) {
    %c0_i32 = arith.constant 0 : i32
    %c0_i32_0 = arith.constant 0 : i32
    %c0_i32_1 = arith.constant 0 : i32
    return %c0_i32, %c0_i32_0 : i32, i32
  }
  func.func @transform_2(%arg0: i32) -> (i32, i32) {
    %c0_i32 = arith.constant 0 : i32
    %c0_i32_0 = arith.constant 0 : i32
    %c0_i32_1 = arith.constant 0 : i32
    return %c0_i32, %c0_i32_0 : i32, i32
  }
  func.func @transform_3(%arg0: i32) -> (i32, i32) {
    %c0_i32 = arith.constant 0 : i32
    %c0_i32_0 = arith.constant 0 : i32
    %c0_i32_1 = arith.constant 0 : i32
    return %c0_i32, %c0_i32_0 : i32, i32
  }
  func.func @transform_4(%arg0: i32) -> (i32, i32) {
    %c0_i32 = arith.constant 0 : i32
    %c0_i32_0 = arith.constant 0 : i32
    %c0_i32_1 = arith.constant 0 : i32
    return %c0_i32, %c0_i32_0 : i32, i32
  }
  func.func @transform_5(%arg0: i32) -> (i32, i32) {
    %c0_i32 = arith.constant 0 : i32
    %c0_i32_0 = arith.constant 0 : i32
    return %arg0, %c0_i32 : i32, i32
  }
}

</mosaic_0001>

<llo_original>
// kernel: conv_module_forward.1
$region0: #{conv_module_forward.1}
  #allocation0 [shape = 'u32[]', space=smem, size = 0x4, offset = 0x4, fixed_abs, tag = 'smem constant byte address 0x4 - core index']
  #allocation1 [shape = 'u32[144,128]{1,0:T(1,128)}', space=vmem, size = 0x12000, scoped, tag = 'internal scratch']
  %s0 = inlined_call_operand.vmem [shape: bf16[32,128], index: 0, kind: input, shape index: {}]
  %s1 = inlined_call_operand.vmem [shape: bf16[128,128], index: 1, kind: input, shape index: {}]
  %s2 = inlined_call_operand.vmem [shape: f32[1,128], index: 2, kind: input, shape index: {}]
  %s3 = inlined_call_operand.vmem [shape: bf16[128,128], index: 3, kind: input, shape index: {}]
  %s4 = inlined_call_operand.vmem [shape: f32[1,128], index: 4, kind: input, shape index: {}]
  %s5 = inlined_call_operand.vmem [shape: f32[32,128], index: 5, kind: output, shape index: {}]
  %s6 = sld [smem:[#allocation0]]
  $region30: #{conv_module_forward.1} parent=0
    _
  %s8 = ssub.s32 1, %s6
  %s9 = scalar_select 0, %s8, %s6
  // Predicated region
  $region2: #{conv_module_forward.1} parent=0 // pred_check
    _
  $region3: #{conv_module_forward.1} parent=0 // pred_check_branch
    %11 = sbr.rel (0) target = $region5
  $region4: #{conv_module_forward.1} parent=0 // pred_region
    _
  $region5: #{conv_module_forward.1} parent=0 // pred_fallthru
    _
  // Predicated region
  $region6: #{conv_module_forward.1} parent=0 // pred_check
    _
  $region7: #{conv_module_forward.1} parent=0 // pred_check_branch
    %13 = sbr.rel (0) target = $region9
  $region8: #{conv_module_forward.1} parent=0 // pred_region
    _
  $region9: #{conv_module_forward.1} parent=0 // pred_fallthru
    _
  // Predicated region
  $region10: #{conv_module_forward.1} parent=0 // pred_check
    _
  $region11: #{conv_module_forward.1} parent=0 // pred_check_branch
    %15 = sbr.rel (0) target = $region13
  $region12: #{conv_module_forward.1} parent=0 // pred_region
    _
  $region13: #{conv_module_forward.1} parent=0 // pred_fallthru
    _
  // Predicated region
  $region14: #{conv_module_forward.1} parent=0 // pred_check
    _
  $region15: #{conv_module_forward.1} parent=0 // pred_check_branch
    %17 = sbr.rel (0) target = $region17
  $region16: #{conv_module_forward.1} parent=0 // pred_region
    _
  $region17: #{conv_module_forward.1} parent=0 // pred_fallthru
    _
  // Predicated region
  $region18: #{conv_module_forward.1} parent=0 // pred_check
    _
  $region19: #{conv_module_forward.1} parent=0 // pred_check_branch
    %19 = sbr.rel (0) target = $region21
  $region20: #{conv_module_forward.1} parent=0 // pred_region
    _
  $region21: #{conv_module_forward.1} parent=0 // pred_fallthru
    _
  %v21 = vld [vmem:[%s2] sm:$0x1]
  %v22 = vld [vmem:[%s0] sm:$0xf]
  %v23 = vld [vmem:[%s0 + $0x4] sm:$0xf]
  %v24 = vld [vmem:[%s0 + $0x8] sm:$0xf]
  %v25 = vld [vmem:[%s0 + $0xc] sm:$0xf]
  %v26 = vld [vmem:[%s1] sm:$0xf]
  %v27 = vld [vmem:[%s1 + $0x4] sm:$0xf]
  %v28 = vld [vmem:[%s1 + $0x8] sm:$0xf]
  %v29 = vld [vmem:[%s1 + $0xc] sm:$0xf]
  %v30 = vld [vmem:[%s1 + $0x10] sm:$0xf]
  %v31 = vld [vmem:[%s1 + $0x14] sm:$0xf]
  %v32 = vld [vmem:[%s1 + $0x18] sm:$0xf]
  %v33 = vld [vmem:[%s1 + $0x1c] sm:$0xf]
  %v34 = vld [vmem:[%s1 + $0x20] sm:$0xf]
  %v35 = vld [vmem:[%s1 + $0x24] sm:$0xf]
  %v36 = vld [vmem:[%s1 + $0x28] sm:$0xf]
  %v37 = vld [vmem:[%s1 + $0x2c] sm:$0xf]
  %v38 = vld [vmem:[%s1 + $0x30] sm:$0xf]
  %v39 = vld [vmem:[%s1 + $0x34] sm:$0xf]
  %v40 = vld [vmem:[%s1 + $0x38] sm:$0xf]
  %v41 = vld [vmem:[%s1 + $0x3c] sm:$0xf]
  %v46 = vunpack.c.l.b16 %v22
  %v47 = vunpack.c.l.b16 %v23
  %v48 = vunpack.c.l.b16 %v24
  %v49 = vunpack.c.l.b16 %v25
  %v50 = vpack.c.b16 %v47, %v46
  %v51 = vpack.c.b16 %v49, %v48
  %v70 = vunpack.c.l.b16 %v26
  %v71 = vunpack.c.l.b16 %v27
  %v72 = vunpack.c.l.b16 %v28
  %v73 = vunpack.c.l.b16 %v29
  %v74 = vunpack.c.l.b16 %v30
  %v75 = vunpack.c.l.b16 %v31
  %v76 = vunpack.c.l.b16 %v32
  %v77 = vunpack.c.l.b16 %v33
  %v78 = vunpack.c.l.b16 %v34
  %v79 = vunpack.c.l.b16 %v35
  %v80 = vunpack.c.l.b16 %v36
  %v81 = vunpack.c.l.b16 %v37
  %v82 = vunpack.c.l.b16 %v38
  %v83 = vunpack.c.l.b16 %v39
  %v84 = vunpack.c.l.b16 %v40
  %v85 = vunpack.c.l.b16 %v41
  %v86 = vpack.c.b16 %v71, %v70
  %v87 = vpack.c.b16 %v73, %v72
  %v88 = vpack.c.b16 %v75, %v74
  %v89 = vpack.c.b16 %v77, %v76
  %v90 = vpack.c.b16 %v79, %v78
  %v91 = vpack.c.b16 %v81, %v80
  %v92 = vpack.c.b16 %v83, %v82
  %v93 = vpack.c.b16 %v85, %v84
  %102 = vmatprep.subr.bf16.mxu0 0
  %103 = vmatpush1.bf16.msra.mxu0 %v86
  %104 = vmatprep.subr.bf16.mxu0 0
  %105 = vmatpush1.bf16.msra.mxu0 %v87
  %106 = vmatprep.subr.bf16.mxu0 0
  %107 = vmatpush1.bf16.msra.mxu0 %v88
  %108 = vmatprep.subr.bf16.mxu0 0
  %109 = vmatpush1.bf16.msra.mxu0 %v89
  %110 = vmatprep.subr.bf16.mxu0 0
  %111 = vmatpush1.bf16.msra.mxu0 %v90
  %112 = vmatprep.subr.bf16.mxu0 0
  %113 = vmatpush1.bf16.msra.mxu0 %v91
  %114 = vmatprep.subr.bf16.mxu0 0
  %115 = vmatpush1.bf16.msra.mxu0 %v92
  %116 = vmatprep.subr.bf16.mxu0 0
  %117 = vmatpush1.bf16.msra.mxu0 %v93
  %118 = vmatprep.subr.bf16.mxu0 0
  %119 = vmatpush1.bf16.msra.mxu0 0
  %120 = vmatprep.subr.bf16.mxu0 0
  %121 = vmatpush1.bf16.msra.mxu0 0
  %122 = vmatprep.subr.bf16.mxu0 0
  %123 = vmatpush1.bf16.msra.mxu0 0
  %124 = vmatprep.subr.bf16.mxu0 0
  %125 = vmatpush1.bf16.msra.mxu0 0
  %126 = vmatprep.subr.bf16.mxu0 0
  %127 = vmatpush1.bf16.msra.mxu0 0
  %128 = vmatprep.subr.bf16.mxu0 0
  %129 = vmatpush1.bf16.msra.mxu0 0
  %130 = vmatprep.subr.bf16.mxu0 0
  %131 = vmatpush1.bf16.msra.mxu0 0
  %132 = vmatprep.subr.bf16.mxu0 0
  %133 = vmatpush1.bf16.msra.mxu0 0
  %134 = vmatprep.mubr.bf16.mxu0 0
  %135 = vmatmul.mubr.bf16.gmra.mrb[0].mxu0 %v50
  %v136 = vpop.f32.mrb[0].mxu0
  %v137 = vadd.f32 0.0, %v136
  %v138 = vpop.f32.mrb[0].mxu0
  %v139 = vpop.f32.mrb[0].mxu0
  %v140 = vadd.f32 0.0, %v139
  %v141 = vpop.f32.mrb[0].mxu0
  %142 = vmatprep.mubr.bf16.mxu0 0
  %143 = vmatmul.mubr.bf16.gmra.mrb[0].mxu0 %v51
  %v144 = vpop.f32.mrb[0].mxu0
  %v145 = vadd.f32 0.0, %v144
  %v146 = vpop.f32.mrb[0].mxu0
  %v147 = vpop.f32.mrb[0].mxu0
  %v148 = vadd.f32 0.0, %v147
  %v149 = vpop.f32.mrb[0].mxu0
  %150 = vdwg.mxu0
  %v152 = vlaneseq
  %v153 = vshrl.u32 %v152, 7
  %v154 = vsub.s32 0, %v153
  %v155 = vrot.slane %v21, %v154
  %v157 = vadd.f32 %v155, %v137
  %v158 = vadd.f32 %v155, %v140
  %v159 = vadd.f32 %v155, %v145
  %v160 = vadd.f32 %v155, %v148
  %vm161 = vcmp.ge.f32.partialorder %v157, 0.0
  %vm162 = vcmp.ge.f32.partialorder %v158, 0.0
  %vm163 = vcmp.ge.f32.partialorder %v159, 0.0
  %vm164 = vcmp.ge.f32.partialorder %v160, 0.0
  %v165 = vmul.f32 %v157, 0.01
  %v166 = vmul.f32 %v158, 0.01
  %v167 = vmul.f32 %v159, 0.01
  %v168 = vmul.f32 %v160, 0.01
  %v169 = vsel %vm161, %v157, %v165
  %v170 = vsel %vm162, %v158, %v166
  %v171 = vsel %vm163, %v159, %v167
  %v172 = vsel %vm164, %v160, %v168
  %v173 = vld [vmem:[%s4] sm:$0x1]
  %v174 = vpack.c.bf16 %v170, %v169
  %v175 = vpack.c.bf16 %v172, %v171
  %v176 = vld [vmem:[%s3] sm:$0xf]
  %v177 = vld [vmem:[%s3 + $0x4] sm:$0xf]
  %v178 = vld [vmem:[%s3 + $0x8] sm:$0xf]
  %v179 = vld [vmem:[%s3 + $0xc] sm:$0xf]
  %v180 = vld [vmem:[%s3 + $0x10] sm:$0xf]
  %v181 = vld [vmem:[%s3 + $0x14] sm:$0xf]
  %v182 = vld [vmem:[%s3 + $0x18] sm:$0xf]
  %v183 = vld [vmem:[%s3 + $0x1c] sm:$0xf]
  %v184 = vld [vmem:[%s3 + $0x20] sm:$0xf]
  %v185 = vld [vmem:[%s3 + $0x24] sm:$0xf]
  %v186 = vld [vmem:[%s3 + $0x28] sm:$0xf]
  %v187 = vld [vmem:[%s3 + $0x2c] sm:$0xf]
  %v188 = vld [vmem:[%s3 + $0x30] sm:$0xf]
  %v189 = vld [vmem:[%s3 + $0x34] sm:$0xf]
  %v190 = vld [vmem:[%s3 + $0x38] sm:$0xf]
  %v191 = vld [vmem:[%s3 + $0x3c] sm:$0xf]
  %v208 = vunpack.c.l.b16 %v176
  %v209 = vunpack.c.l.b16 %v177
  %v210 = vunpack.c.l.b16 %v178
  %v211 = vunpack.c.l.b16 %v179
  %v212 = vunpack.c.l.b16 %v180
  %v213 = vunpack.c.l.b16 %v181
  %v214 = vunpack.c.l.b16 %v182
  %v215 = vunpack.c.l.b16 %v183
  %v216 = vunpack.c.l.b16 %v184
  %v217 = vunpack.c.l.b16 %v185
  %v218 = vunpack.c.l.b16 %v186
  %v219 = vunpack.c.l.b16 %v187
  %v220 = vunpack.c.l.b16 %v188
  %v221 = vunpack.c.l.b16 %v189
  %v222 = vunpack.c.l.b16 %v190
  %v223 = vunpack.c.l.b16 %v191
  %v224 = vpack.c.b16 %v209, %v208
  %v225 = vpack.c.b16 %v211, %v210
  %v226 = vpack.c.b16 %v213, %v212
  %v227 = vpack.c.b16 %v215, %v214
  %v228 = vpack.c.b16 %v217, %v216
  %v229 = vpack.c.b16 %v219, %v218
  %v230 = vpack.c.b16 %v221, %v220
  %v231 = vpack.c.b16 %v223, %v222
  %240 = vmatprep.subr.bf16.mxu0 0
  %241 = vmatpush1.bf16.msra.mxu0 %v224
  %242 = vmatprep.subr.bf16.mxu0 0
  %243 = vmatpush1.bf16.msra.mxu0 %v225
  %244 = vmatprep.subr.bf16.mxu0 0
  %245 = vmatpush1.bf16.msra.mxu0 %v226
  %246 = vmatprep.subr.bf16.mxu0 0
  %247 = vmatpush1.bf16.msra.mxu0 %v227
  %248 = vmatprep.subr.bf16.mxu0 0
  %249 = vmatpush1.bf16.msra.mxu0 %v228
  %250 = vmatprep.subr.bf16.mxu0 0
  %251 = vmatpush1.bf16.msra.mxu0 %v229
  %252 = vmatprep.subr.bf16.mxu0 0
  %253 = vmatpush1.bf16.msra.mxu0 %v230
  %254 = vmatprep.subr.bf16.mxu0 0
  %255 = vmatpush1.bf16.msra.mxu0 %v231
  %256 = vmatprep.subr.bf16.mxu0 0
  %257 = vmatpush1.bf16.msra.mxu0 0
  %258 = vmatprep.subr.bf16.mxu0 0
  %259 = vmatpush1.bf16.msra.mxu0 0
  %260 = vmatprep.subr.bf16.mxu0 0
  %261 = vmatpush1.bf16.msra.mxu0 0
  %262 = vmatprep.subr.bf16.mxu0 0
  %263 = vmatpush1.bf16.msra.mxu0 0
  %264 = vmatprep.subr.bf16.mxu0 0
  %265 = vmatpush1.bf16.msra.mxu0 0
  %266 = vmatprep.subr.bf16.mxu0 0
  %267 = vmatpush1.bf16.msra.mxu0 0
  %268 = vmatprep.subr.bf16.mxu0 0
  %269 = vmatpush1.bf16.msra.mxu0 0
  %270 = vmatprep.subr.bf16.mxu0 0
  %271 = vmatpush1.bf16.msra.mxu0 0
  %272 = vmatprep.mubr.bf16.mxu0 0
  %273 = vmatmul.mubr.bf16.gmra.mrb[0].mxu0 %v174
  %v274 = vpop.f32.mrb[0].mxu0
  %v275 = vadd.f32 0.0, %v274
  %v276 = vpop.f32.mrb[0].mxu0
  %v277 = vpop.f32.mrb[0].mxu0
  %v278 = vadd.f32 0.0, %v277
  %v279 = vpop.f32.mrb[0].mxu0
  %280 = vmatprep.mubr.bf16.mxu0 0
  %281 = vmatmul.mubr.bf16.gmra.mrb[0].mxu0 %v175
  %v282 = vpop.f32.mrb[0].mxu0
  %v283 = vadd.f32 0.0, %v282
  %v284 = vpop.f32.mrb[0].mxu0
  %v285 = vpop.f32.mrb[0].mxu0
  %v286 = vadd.f32 0.0, %v285
  %v287 = vpop.f32.mrb[0].mxu0
  %288 = vdwg.mxu0
  %v290 = vlaneseq
  %v291 = vshrl.u32 %v290, 7
  %v292 = vsub.s32 0, %v291
  %v293 = vrot.slane %v173, %v292
  %v295 = vadd.f32 %v293, %v275
  %v296 = vadd.f32 %v293, %v278
  %v297 = vadd.f32 %v293, %v283
  %v298 = vadd.f32 %v293, %v286
  %v299 = vtanh.pop %v295
  %v300 = vtanh.pop %v296
  %v301 = vtanh.pop %v297
  %v302 = vtanh.pop %v298
  %303 = vst [vmem:[%s5] sm:$0xff] %v299
  %304 = vst [vmem:[%s5 + $0x8] sm:$0xff] %v300
  %305 = vst [vmem:[%s5 + $0x10] sm:$0xff] %v301
  %306 = vst [vmem:[%s5 + $0x18] sm:$0xff] %v302
  // Predicated region
  $region22: #{conv_module_forward.1} parent=0 // pred_check
    _
  $region23: #{conv_module_forward.1} parent=0 // pred_check_branch
    %308 = sbr.rel (0) target = $region25
  $region24: #{conv_module_forward.1} parent=0 // pred_region
    _
  $region25: #{conv_module_forward.1} parent=0 // pred_fallthru
    _
  // Predicated region
  $region26: #{conv_module_forward.1} parent=0 // pred_check
    _
  $region27: #{conv_module_forward.1} parent=0 // pred_check_branch
    %310 = sbr.rel (0) target = $region29
  $region28: #{conv_module_forward.1} parent=0 // pred_region
    _
  $region29: #{conv_module_forward.1} parent=0 // pred_fallthru
    _

</llo_original>
